<compile_context>
chip_gen: v5e
topology: v5e:2x2
jax: 0.10.0
libtpu: 0.0.40
codegen_flags: <defaults>
</compile_context>

<pallas_src>
import math

import jax
import jax.numpy as jnp
from jax.experimental import pallas as pl
from jax.experimental.pallas import tpu as pltpu


_LANE = 128
_SUBLANE = 8
# Below this output size, pallas_call launch + pipeline overhead dominates.
_MIN_PALLAS_BYTES = 1 << 20


def _sublane_pack(*dtypes) -> int:
    """Minimum legal row-tile multiple covering all dtypes (8 f32 / 16 bf16 / 32 i8)."""
    pack = _SUBLANE
    for dt in dtypes:
        its = jnp.dtype(dt).itemsize
        pack = max(pack, _SUBLANE * max(1, 4 // its))
    return pack


def _default_block_bytes() -> int:
    """~8 MiB blocks on 128-MiB-VMEM parts (v5e/v6e), ~4 MiB on 64-MiB parts (v7x)."""
    try:
        vmem = pltpu.get_tpu_info().vmem_capacity_bytes
    except Exception:
        vmem = 64 * 1024 * 1024  # conservative (v7x-sized) fallback
    return (8 if vmem >= 96 * 1024 * 1024 else 4) * 1024 * 1024


def _pick_row_tile(rows: int, target_rows: int, pack: int) -> int:
    """Row tile: multiple of `pack` (or full extent), split >=2 ways if it all fits."""
    target_rows = max(pack, (target_rows // pack) * pack)
    if rows > target_rows:
        return target_rows
    # Everything fits in one block: still split into >= 2 row blocks when
    # possible so dimension_semantics="parallel" can shard across v7x's 2 TCs.
    if rows >= 2 * pack:
        half = -(-rows // 2)                       # ceil(rows / 2)
        return (-(-half // pack)) * pack           # round up to pack multiple
    return rows                                    # tiny: full-extent block


def _lane_dense_row_len(total_elems: int, d: int):
    """Row length (multiple of 128, multiple of d) for a lane-dense 2D view, or None."""
    base = (d * _LANE) // math.gcd(d, _LANE)       # lcm(d, 128)
    if total_elems % base != 0:
        return None
    cap = max(base, 2048)                          # widen rows up to ~2048 lanes
    best = base
    row = 2 * base
    while row <= cap:
        if total_elems % row == 0:
            best = row
        row += base
    return best


def _prompt_dot_kernel(emb_ref, w_ref, out_ref):
    # emb_ref: (tile_n, tile_d) embedding tile
    # w_ref:   (grid_d, tile_d) -- the ENTIRE weight, resident in VMEM; row j
    #          holds the weight slice matching the j-th D tile.
    # out_ref: (tile_n, tile_d) output tile (possibly wider dtype than emb).
    j = pl.program_id(1)
    w = w_ref[pl.ds(j, 1), :]                      # (1, tile_d), broadcast over rows
    out_ref[...] = (emb_ref[...] * w).astype(out_ref.dtype)


def _run_2d(emb2: jax.Array, w2: jax.Array, tile_n: int, tile_d: int,
            out_dtype) -> jax.Array:
    """emb2: (R, C), w2: (1, C) -> (R, C) elementwise mul with row broadcast."""
    R, C = emb2.shape
    grid_n = pl.cdiv(R, tile_n)
    grid_d = pl.cdiv(C, tile_d)

    # Keep the whole weight resident in VMEM as (grid_d, tile_d): no per-step
    # weight DMA; the kernel picks its row with program_id(1).
    pad = grid_d * tile_d - C
    w_full = jnp.pad(w2, ((0, 0), (0, pad))) if pad else w2
    w_full = w_full.reshape(grid_d, tile_d)

    # Computed VMEM budget: double-buffered input + output blocks + weight + margin.
    in_bytes = tile_n * tile_d * jnp.dtype(emb2.dtype).itemsize
    out_bytes = tile_n * tile_d * jnp.dtype(out_dtype).itemsize
    w_bytes = w_full.size * jnp.dtype(w_full.dtype).itemsize
    vmem_limit = max(2 * (in_bytes + out_bytes) + w_bytes + (4 << 20),
                     32 * 1024 * 1024)

    return pl.pallas_call(
        _prompt_dot_kernel,
        out_shape=jax.ShapeDtypeStruct((R, C), out_dtype),
        grid_spec=pltpu.PrefetchScalarGridSpec(
            num_scalar_prefetch=0,
            grid=(grid_n, grid_d),
            in_specs=[
                pl.BlockSpec((tile_n, tile_d), lambda i, j: (i, j)),
                pl.BlockSpec((grid_d, tile_d), lambda i, j: (0, 0)),  # weight resident
            ],
            out_specs=pl.BlockSpec((tile_n, tile_d), lambda i, j: (i, j)),
        ),
        compiler_params=pltpu.CompilerParams(
            dimension_semantics=("parallel", "parallel"),
            vmem_limit_bytes=int(vmem_limit),
        ),
    )(emb2, w_full)


def node_prompt_dot(embedding: jax.Array, weight: jax.Array, *,
                    block_bytes: int | None = None,
                    max_tile_d: int = 2048,
                    min_pallas_bytes: int = _MIN_PALLAS_BYTES,
                    force_pallas: bool = False) -> jax.Array:
    """embedding: [N, D], weight: [1, D] -> [N, D] (embedding * weight)."""
    N, D = embedding.shape
    assert weight.shape == (1, D)
    # Match PyTorch type promotion (e.g. bf16 * f32 -> f32); do NOT downcast weight.
    out_dtype = jnp.result_type(embedding.dtype, weight.dtype)

    out_total = N * D * jnp.dtype(out_dtype).itemsize
    if not force_pallas and out_total < min_pallas_bytes:
        # The module's native sizes (e.g. 16x32) are tiny: a standalone
        # pallas_call is pure overhead, and plain XLA lets this fuse into
        # producers/consumers.
        return (embedding * weight).astype(out_dtype)

    budget = _default_block_bytes()
    block_bytes = budget if block_bytes is None else max(1, min(block_bytes, budget))
    emb_itemsize = jnp.dtype(embedding.dtype).itemsize
    block_elems = max(_SUBLANE * _LANE, block_bytes // emb_itemsize)
    pack = _sublane_pack(embedding.dtype, out_dtype)
    max_tile_d = max(_LANE, (max_tile_d // _LANE) * _LANE)

    # Lane-dense path for D % 128 != 0: view [N, D] as [M, L] with L a multiple
    # of both D and 128 so output stores are full-width (no masked partial vst),
    # and tile the weight row L//D times to preserve broadcast semantics.
    if D % _LANE != 0:
        L = _lane_dense_row_len(N * D, D)
        if L is not None and L <= max_tile_d:
            M = (N * D) // L
            emb2 = embedding.reshape(M, L)          # contiguous: metadata-only
            w2 = jnp.tile(weight, (1, L // D))
            tile_n = _pick_row_tile(M, block_elems // L, pack)
            out2 = _run_2d(emb2, w2, tile_n, L, out_dtype)
            return out2.reshape(N, D)

    # General path: D already a multiple of 128 (lane-dense as-is) or no clean
    # lane-dense view exists. Tile D only when a full row exceeds max_tile_d.
    tile_d = D if D <= max_tile_d else max_tile_d
    tile_n = _pick_row_tile(N, max(pack, block_elems // tile_d), pack)
    return _run_2d(embedding, weight, tile_n, tile_d, out_dtype)


if __name__ == "__main__":
    key = jax.random.PRNGKey(0)
    k0, k1, k2, k3, k4, k5 = jax.random.split(key, 6)

    # 1) Module's natural tiny shape (16 nodes, input_dim=32): small-input bypass.
    emb = jax.random.normal(k0, (16, 32), dtype=jnp.float32)
    w = jax.random.normal(k1, (1, 32), dtype=jnp.float32)
    out = jax.block_until_ready(node_prompt_dot(emb, w))
    assert out.shape == (16, 32)
    assert jnp.allclose(out, emb * w, atol=1e-6, rtol=1e-6)

    # 2) Pallas lane-dense path, D < 128 (typical prompt dim), forced through Pallas.
    emb = jax.random.normal(k2, (256, 32), dtype=jnp.float32)
    w = jax.random.normal(k3, (1, 32), dtype=jnp.float32)
    out = jax.block_until_ready(node_prompt_dot(emb, w, force_pallas=True))
    assert jnp.allclose(out, emb * w, atol=1e-6, rtol=1e-6)

    # 3) Pallas lane-dense path, D % 128 != 0 with D > 128 (D=160 -> 1280-lane rows).
    emb = jax.random.normal(k4, (512, 160), dtype=jnp.float32)
    w = jax.random.normal(k5, (1, 160), dtype=jnp.float32)
    out = jax.block_until_ready(node_prompt_dot(emb, w, force_pallas=True))
    assert jnp.allclose(out, emb * w, atol=1e-6, rtol=1e-6)

    # 4) General path with D tiled (exercises the resident-weight row select).
    ka, kb = jax.random.split(k5)
    emb = jax.random.normal(ka, (96, 512), dtype=jnp.float32)
    w = jax.random.normal(kb, (1, 512), dtype=jnp.float32)
    out = jax.block_until_ready(
        node_prompt_dot(emb, w, force_pallas=True, max_tile_d=256))
    assert jnp.allclose(out, emb * w, atol=1e-6, rtol=1e-6)

    # 5) Mixed dtype: bf16 embedding * f32 weight promotes to f32 (torch parity).
    kc, kd = jax.random.split(ka)
    emb = jax.random.normal(kc, (128, 256), dtype=jnp.bfloat16)
    w = jax.random.normal(kd, (1, 256), dtype=jnp.float32)
    out = jax.block_until_ready(node_prompt_dot(emb, w, force_pallas=True))
    assert out.dtype == jnp.float32
    assert jnp.allclose(out, emb.astype(jnp.float32) * w, atol=1e-3, rtol=1e-3)

    print("KERNEL_OK")
</pallas_src>

<mosaic_0001>
module attributes {stable_mosaic.version = 11 : i64} {
  func.func @_prompt_dot_kernel(%arg0: i32, %arg1: i32, %arg2: memref<4x2048xf32, #tpu.memory_space<vmem>>, %arg3: memref<1x2048xf32, #tpu.memory_space<vmem>>, %arg4: memref<4x2048xf32, #tpu.memory_space<vmem>>) attributes {dimension_semantics = [#tpu.dimension_semantics<parallel>, #tpu.dimension_semantics<parallel>], iteration_bounds = array<i64: 1, 1>, scalar_prefetch = 0 : i64, scratch_operands = 0 : i64, tpu.core_type = #tpu.core_type<tc>, window_params = [{transform_indices = @transform_0, window_bounds = array<i64: 4, 2048>}, {pipeline_mode = #tpu.pipeline_mode<synchronous>, transform_indices = @transform_1, window_bounds = array<i64: 1, 2048>}, {transform_indices = @transform_2, window_bounds = array<i64: 4, 2048>}]} {
    %0 = arith.index_cast %arg1 : i32 to index
    %c0 = arith.constant 0 : index
    %1 = vector.load %arg3[%0, %c0] : memref<1x2048xf32, #tpu.memory_space<vmem>>, vector<1x2048xf32>
    %c0_0 = arith.constant 0 : index
    %c0_1 = arith.constant 0 : index
    %2 = vector.load %arg2[%c0_0, %c0_1] : memref<4x2048xf32, #tpu.memory_space<vmem>>, vector<4x2048xf32>
    %3 = vector.broadcast %1 : vector<1x2048xf32> to vector<4x2048xf32>
    %4 = arith.mulf %2, %3 : vector<4x2048xf32>
    %c0_2 = arith.constant 0 : index
    %c0_3 = arith.constant 0 : index
    %5 = vector.load %arg4[%c0_2, %c0_3] : memref<4x2048xf32, #tpu.memory_space<vmem>>, vector<4x2048xf32>
    tpu.vector_store %arg4[%c0_2, %c0_3], %4 {strides = array<i32>} : memref<4x2048xf32, #tpu.memory_space<vmem>>, vector<4x2048xf32>,
    return
  }
  func.func @transform_0(%arg0: i32, %arg1: i32) -> (i32, i32) {
    %c0_i32 = arith.constant 0 : i32
    return %arg0, %arg1 : i32, i32
  }
  func.func @transform_1(%arg0: i32, %arg1: i32) -> (i32, i32) {
    %c0_i32 = arith.constant 0 : i32
    %c0_i32_0 = arith.constant 0 : i32
    %c0_i32_1 = arith.constant 0 : i32
    return %c0_i32, %c0_i32_0 : i32, i32
  }
  func.func @transform_2(%arg0: i32, %arg1: i32) -> (i32, i32) {
    %c0_i32 = arith.constant 0 : i32
    return %arg0, %arg1 : i32, i32
  }
}

</mosaic_0001>

<llo_original>
// kernel: tpu_custom_call.1
$region0: #{tpu_custom_call.1}
  #allocation0 [shape = 'u32[]', space=smem, size = 0x4, offset = 0x4, fixed_abs, tag = 'smem constant byte address 0x4 - core index']
  #allocation1 [shape = 'u32[72,128]{1,0:T(1,128)}', space=vmem, size = 0x9000, scoped, tag = 'internal scratch']
  %s0 = inlined_call_operand.hbm [shape: f32[4,2048], index: 0, kind: input, shape index: {}]
  %s1 = inlined_call_operand.hbm [shape: f32[1,2048], index: 1, kind: input, shape index: {}]
  %s2 = inlined_call_operand.hbm [shape: f32[4,2048], index: 2, kind: output, shape index: {}]
  %s3 = sld [smem:[#allocation0]]
  $region26: #{tpu_custom_call.1} parent=0
    _
  %s5 = ssub.s32 1, %s3
  %s6 = scalar_select 0, %s5, %s3
  $region1: #{tpu_custom_call.1} parent=0
    #allocation2 [shape = 'u8[32768]{0}', space=vmem, size = 0x8000, scoped, tag = 'input window, operand 0, single buffered']
    #allocation3 [shape = 's32[1]{0}', space=sflag, size = 0x4, scoped, tag = 'scoped memory for tpu_custom_call.1']
    #allocation4 [shape = 's32[1]{0}', space=sflag, size = 0x4, scoped, tag = 'scoped memory for tpu_custom_call.1']
    #allocation5 [shape = 'u8[8192]{0}', space=vmem, size = 0x2000, scoped, tag = 'input window, operand 1, single buffered']
    #allocation6 [shape = 's32[1]{0}', space=sflag, size = 0x4, scoped, tag = 'scoped memory for tpu_custom_call.1']
    #allocation7 [shape = 'u8[32768]{0}', space=vmem, size = 0x8000, scoped, tag = 'output window, operand 0, single buffered']
    %7 = vsyncpa [#allocation3], 0
    %8 = vsyncpa [#allocation6], 0
    %9 = vsyncpa [#allocation4], 0
    // Predicated region
    $region2: #{tpu_custom_call.1} parent=1 // pred_check
      _
    $region3: #{tpu_custom_call.1} parent=1 // pred_check_branch
      %11 = sbr.rel (0) target = $region5
    $region4: #{tpu_custom_call.1} parent=1 // pred_region
      %13 = vsyncadd [#allocation3], 0
      %s15 = sshll.u32 %s0, 4
      %s16 = int_to_ptr.hbm [resolvable:$true] %s15
      %s17 = sshll.u32 [#allocation2], 4
      %s18 = int_to_ptr.vmem [resolvable:$true] %s17
      %20 = dma.hbm_to_vmem [thread:$0]  %s16, 1024, %s18, [#allocation3]
    $region5: #{tpu_custom_call.1} parent=1 // pred_fallthru
      _
    // Predicated region
    $region6: #{tpu_custom_call.1} parent=1 // pred_check
      _
    $region7: #{tpu_custom_call.1} parent=1 // pred_check_branch
      %22 = sbr.rel (0) target = $region9
    $region8: #{tpu_custom_call.1} parent=1 // pred_region
      %24 = vsyncadd [#allocation6], 0
      %s26 = sshll.u32 %s1, 4
      %s27 = int_to_ptr.hbm [resolvable:$true] %s26
      %s28 = sshll.u32 [#allocation5], 4
      %s29 = int_to_ptr.vmem [resolvable:$true] %s28
      %31 = dma.hbm_to_vmem [thread:$0]  %s27, 256, %s29, [#allocation6]
    $region9: #{tpu_custom_call.1} parent=1 // pred_fallthru
      _
    // Predicated region
    $region10: #{tpu_custom_call.1} parent=1 // pred_check
      _
    $region11: #{tpu_custom_call.1} parent=1 // pred_check_branch
      %33 = sbr.rel (0) target = $region13
    $region12: #{tpu_custom_call.1} parent=1 // pred_region
      %35 = dma.done [#allocation3], 1024
    $region13: #{tpu_custom_call.1} parent=1 // pred_fallthru
      _
    // Predicated region
    $region14: #{tpu_custom_call.1} parent=1 // pred_check
      _
    $region15: #{tpu_custom_call.1} parent=1 // pred_check_branch
      %37 = sbr.rel (0) target = $region17
    $region16: #{tpu_custom_call.1} parent=1 // pred_region
      %39 = dma.done [#allocation6], 256
    $region17: #{tpu_custom_call.1} parent=1 // pred_fallthru
      _
    %s40 = smul.u32 0, 16
    %s41 = scalar_lea.vmem [#allocation5], %s40
    %v42 = vld [vmem:[%s41] sm:$0xff]
    %v43 = vld [vmem:[%s41 + $0x8] sm:$0xff]
    %v44 = vld [vmem:[#allocation2] sm:$0xff]
    %v45 = vld [vmem:[#allocation2 + $0x8] sm:$0xff]
    %v46 = vld [vmem:[#allocation2 + $0x10] sm:$0xff]
    %v47 = vld [vmem:[#allocation2 + $0x18] sm:$0xff]
    %v48 = vld [vmem:[#allocation2 + $0x20] sm:$0xff]
    %v49 = vld [vmem:[#allocation2 + $0x28] sm:$0xff]
    %v50 = vld [vmem:[#allocation2 + $0x30] sm:$0xff]
    %v51 = vld [vmem:[#allocation2 + $0x38] sm:$0xff]
    %v54 = vperm.slane %v42, 0
    %v55 = vperm.slane %v42, 1
    %v56 = vperm.slane %v42, 2
    %v57 = vperm.slane %v42, 3
    %v58 = vperm.slane %v42, 4
    %v59 = vperm.slane %v42, 5
    %v60 = vperm.slane %v42, 6
    %v61 = vperm.slane %v42, 7
    %v62 = vperm.slane %v43, 0
    %v63 = vperm.slane %v43, 1
    %v64 = vperm.slane %v43, 2
    %v65 = vperm.slane %v43, 3
    %v66 = vperm.slane %v43, 4
    %v67 = vperm.slane %v43, 5
    %v68 = vperm.slane %v43, 6
    %v69 = vperm.slane %v43, 7
    %v70 = vrot.slane %v55, 4
    %v71 = vrot.slane %v57, 4
    %v72 = vrot.slane %v59, 4
    %v73 = vrot.slane %v61, 4
    %v74 = vrot.slane %v63, 4
    %v75 = vrot.slane %v65, 4
    %v76 = vrot.slane %v67, 4
    %v77 = vrot.slane %v69, 4
    %vm78 = vcmask 1043456
    %v79 = vsel %vm78, %v54, %v70
    %v80 = vsel %vm78, %v56, %v71
    %v81 = vsel %vm78, %v58, %v72
    %v82 = vsel %vm78, %v60, %v73
    %v83 = vsel %vm78, %v62, %v74
    %v84 = vsel %vm78, %v64, %v75
    %v85 = vsel %vm78, %v66, %v76
    %v86 = vsel %vm78, %v68, %v77
    %v95 = vmul.f32 %v44, %v79
    %v96 = vmul.f32 %v45, %v80
    %v97 = vmul.f32 %v46, %v81
    %v98 = vmul.f32 %v47, %v82
    %v99 = vmul.f32 %v48, %v83
    %v100 = vmul.f32 %v49, %v84
    %v101 = vmul.f32 %v50, %v85
    %v102 = vmul.f32 %v51, %v86
    %103 = vst [vmem:[#allocation7] sm:$0xff] %v95
    %104 = vst [vmem:[#allocation7 + $0x8] sm:$0xff] %v96
    %105 = vst [vmem:[#allocation7 + $0x10] sm:$0xff] %v97
    %106 = vst [vmem:[#allocation7 + $0x18] sm:$0xff] %v98
    %107 = vst [vmem:[#allocation7 + $0x20] sm:$0xff] %v99
    %108 = vst [vmem:[#allocation7 + $0x28] sm:$0xff] %v100
    %109 = vst [vmem:[#allocation7 + $0x30] sm:$0xff] %v101
    %110 = vst [vmem:[#allocation7 + $0x38] sm:$0xff] %v102
    // Predicated region
    $region18: #{tpu_custom_call.1} parent=1 // pred_check
      _
    $region19: #{tpu_custom_call.1} parent=1 // pred_check_branch
      %112 = sbr.rel (0) target = $region21
    $region20: #{tpu_custom_call.1} parent=1 // pred_region
      %114 = vsyncadd [#allocation4], 0
      %s116 = sshll.u32 [#allocation7], 4
      %s117 = int_to_ptr.vmem [resolvable:$true] %s116
      %s118 = sshll.u32 %s2, 4
      %s119 = int_to_ptr.hbm [resolvable:$true] %s118
      %121 = dma.vmem_to_hbm [thread:$0]  %s117, 1024, %s119, [#allocation4]
    $region21: #{tpu_custom_call.1} parent=1 // pred_fallthru
      _
    // Predicated region
    $region22: #{tpu_custom_call.1} parent=1 // pred_check
      _
    $region23: #{tpu_custom_call.1} parent=1 // pred_check_branch
      %123 = sbr.rel (0) target = $region25
    $region24: #{tpu_custom_call.1} parent=1 // pred_region
      %125 = dma.done [#allocation4], 1024
    $region25: #{tpu_custom_call.1} parent=1 // pred_fallthru
      _
    %126 = vsyncpa [#allocation3], 1
    %127 = vsyncpa [#allocation6], 1
    %128 = vsyncpa [#allocation4], 1

</llo_original>
